<compile_context>
chip_gen: v5e
topology: v5e:2x2
jax: 0.10.0
libtpu: 0.0.40
codegen_flags: <defaults>
</compile_context>

<pallas_src>
import functools

import jax
import jax.numpy as jnp
from jax.experimental import pallas as pl
from jax.experimental.pallas import tpu as pltpu


def _conv1x1_kernel(x_ref, w_ref, o_ref, *, use_vpu):
    # x_ref / o_ref: (NB, C, THW) tile;  w_ref: (C, C) full weight.
    # z[b, co, s] = sum_ci W[co, ci] * x[b, ci, s]
    w = w_ref[...]
    if use_vpu:
        # Small/medium C: MXU would be padded to 128/256 and become the
        # bottleneck at <4% utilization; do C broadcast-FMAs on the VPU
        # instead (static unroll, C known at trace time). Hidden under DMA.
        x = x_ref[...]                       # (NB, C, T)
        c = w.shape[0]
        acc = w[:, 0:1] * x[:, 0:1, :]       # (C,1)*(NB,1,T) -> (NB,C,T)
        for ci in range(1, c):
            acc = acc + w[:, ci:ci + 1] * x[:, ci:ci + 1, :]
        o_ref[...] = acc.astype(o_ref.dtype)
    else:
        # Large C: MXU matmul per fused batch element (static unroll over NB),
        # full f32 precision (no bf16 truncation pass).
        nb = x_ref.shape[0]
        for b in range(nb):
            o_ref[b] = jnp.dot(
                w, x_ref[b],
                preferred_element_type=jnp.float32,
                precision=jax.lax.Precision.HIGHEST,
            ).astype(o_ref.dtype)


def _choose_tiling(n, c, hw, dtype_bytes):
    """Pick (nb, thw, vmem_limit_bytes).

    Goals: (a) several MiB of in+out traffic per grid step so the ~0.35us
    per-step overhead is amortized, (b) stay inside a generation-aware VMEM
    budget (v7x: 64 MiB/TC, v5e/v6e: 128 MiB), (c) leave >= 2 grid steps on
    the parallel axes so v7x's two TensorCores both get work.
    """
    try:
        vmem_cap = int(pltpu.get_tpu_info().vmem_capacity_bytes)
    except Exception:  # not resolvable at trace time -> assume smallest (v7x)
        vmem_cap = 64 * 1024 * 1024

    budget = int(vmem_cap * 0.45)            # scoped VMEM we are willing to use
    w_bytes = c * c * dtype_bytes
    # Input and output tiles are each double-buffered by the Pallas pipeline.
    tile_budget = max(128 * c * dtype_bytes, (budget - 2 * w_bytes) // 4)

    row_bytes = c * dtype_bytes
    max_lanes = max(128, (tile_budget // row_bytes) // 128 * 128)

    if hw % 128 != 0 or hw <= max_lanes:
        # Spatial axis either fits in one tile or must be taken whole to
        # satisfy the (8,128) rule -> cover it fully, fuse batch elements.
        thw = hw
        nb = max(1, min(n, tile_budget // max(1, c * thw * dtype_bytes)))
    else:
        thw = min(max_lanes, (hw // 128) * 128)
        nb = 1

    def _steps(nb_, thw_):
        return (-(-n // nb_)) * (-(-hw // thw_))

    # Megacore: make sure both TensorCores (v7x) can get a grid step.
    if _steps(nb, thw) < 2:
        if nb >= 2:
            nb = (nb + 1) // 2
        elif hw % 128 == 0 and hw >= 256:
            half = ((hw // 2 + 127) // 128) * 128
            if nb * c * half * dtype_bytes >= (2 << 20):
                thw = half

    tile_bytes = nb * c * thw * dtype_bytes
    need = 4 * tile_bytes + 2 * w_bytes + (2 << 20)   # pipeline bufs + headroom
    vmem_limit = int(min(max(need, 16 << 20), int(vmem_cap * 0.9)))
    return nb, thw, vmem_limit


def invertible_conv1x1_forward(x, weight, logdet=None, reverse=False):
    """Forward of InvertibleConv1x1 (lu=False path).

    x: (N, C, H, W), weight: (C, C).  Returns (z, logdet) matching the
    PyTorch module semantics (z = conv1x1(x, W) or conv1x1(x, W^-1)).
    """
    n, c, h, w_sp = x.shape
    hw = h * w_sp
    db = jnp.dtype(x.dtype).itemsize

    # ---- weight / dlogdet prep (glue, plain JAX, stays in f32) ----
    _, logabsdet = jnp.linalg.slogdet(weight)
    dlogdet = logabsdet * (h * w_sp)
    if reverse:
        # f32 inverse + one Newton-Schulz refinement step (replaces PyTorch's
        # f64 inverse without enabling global x64 / f64 linalg on TPU).
        w_inv = jnp.linalg.inv(weight)
        eye = jnp.eye(c, dtype=weight.dtype)
        corr = 2.0 * eye - jnp.dot(weight, w_inv,
                                   precision=jax.lax.Precision.HIGHEST)
        w_eff = jnp.dot(w_inv, corr, precision=jax.lax.Precision.HIGHEST)
    else:
        w_eff = weight

    # ---- NCHW-native flatten: (N, C, H, W) -> (N, C, H*W)  (free reshape) ----
    x_flat = x.reshape(n, c, hw)

    nb, thw, vmem_limit = _choose_tiling(n, c, hw, db)
    grid = (pl.cdiv(n, nb), pl.cdiv(hw, thw))

    use_vpu = c <= 32   # crossover per perf review; MXU only pays off for big C
    kernel = functools.partial(_conv1x1_kernel, use_vpu=use_vpu)

    cost = pl.CostEstimate(
        flops=2 * n * hw * c * c,
        transcendentals=0,
        bytes_accessed=(2 * n * c * hw + c * c) * db,
    )

    z_flat = pl.pallas_call(
        kernel,
        out_shape=jax.ShapeDtypeStruct((n, c, hw), x.dtype),
        grid_spec=pltpu.PrefetchScalarGridSpec(
            num_scalar_prefetch=0,
            grid=grid,
            in_specs=[
                pl.BlockSpec((nb, c, thw), lambda b, s: (b, 0, s)),
                pl.BlockSpec((c, c), lambda b, s: (0, 0)),
            ],
            out_specs=pl.BlockSpec((nb, c, thw), lambda b, s: (b, 0, s)),
        ),
        compiler_params=pltpu.CompilerParams(
            dimension_semantics=("parallel", "parallel"),
            vmem_limit_bytes=vmem_limit,
        ),
        cost_estimate=cost,
    )(x_flat, w_eff)

    # ---- back to NCHW (free reshape) ----
    z = z_flat.reshape(n, c, h, w_sp)

    if not reverse:
        logdet = (logdet + dlogdet) if logdet is not None else dlogdet
    else:
        logdet = (logdet - dlogdet) if logdet is not None else -dlogdet
    return z, logdet


def init_weight(key, nchan):
    """Deterministic init matching torch.qr(torch.randn(C, C))[0]."""
    w_rand = jax.random.normal(key, (nchan, nchan), dtype=jnp.float32)
    q, _ = jnp.linalg.qr(w_rand)
    return q.astype(jnp.float32)


def _run_case(key, n, c, h, w):
    k_w, k_x = jax.random.split(key)
    weight = init_weight(k_w, c)
    x = jax.random.normal(k_x, (n, c, h, w), dtype=jnp.float32)

    # forward
    z, logdet = invertible_conv1x1_forward(x, weight, logdet=None, reverse=False)
    z = jax.block_until_ready(z)
    logdet = jax.block_until_ready(logdet)

    # reference 1x1 conv (full precision so the comparison is meaningful)
    z_ref = jnp.einsum("oc,nchw->nohw", weight, x,
                       precision=jax.lax.Precision.HIGHEST)
    assert jnp.allclose(z, z_ref, atol=1e-4, rtol=1e-4), "mismatch vs reference"
    _, logabsdet = jnp.linalg.slogdet(weight)
    assert jnp.allclose(logdet, logabsdet * h * w, atol=1e-4), "logdet mismatch"

    # reverse should reconstruct x and negate dlogdet
    x_rec, logdet_rt = invertible_conv1x1_forward(z, weight, logdet=logdet,
                                                  reverse=True)
    x_rec = jax.block_until_ready(x_rec)
    assert jnp.allclose(x_rec, x, atol=1e-3, rtol=1e-3), \
        "reverse reconstruction mismatch"
    assert jnp.allclose(logdet_rt, 0.0, atol=1e-4), "round-trip logdet mismatch"


if __name__ == "__main__":
    key = jax.random.PRNGKey(0)
    k1, k2 = jax.random.split(key)

    # Small-C shape: exercises the VPU broadcast-FMA path + batch fusion.
    _run_case(k1, n=2, c=4, h=16, w=16)

    # Larger-C, small-spatial shape (Glow deep level): exercises the MXU path
    # with a non-128-multiple spatial axis taken as a full tile.
    _run_case(k2, n=2, c=48, h=8, w=8)

    print("KERNEL_OK")
</pallas_src>

<mosaic_0001>
module attributes {stable_mosaic.version = 11 : i64} {
  func.func @_conv1x1_kernel(%arg0: i32, %arg1: i32, %arg2: memref<1x4x256xf32, #tpu.memory_space<vmem>>, %arg3: memref<4x4xf32, #tpu.memory_space<vmem>>, %arg4: memref<1x4x256xf32, #tpu.memory_space<vmem>>) attributes {dimension_semantics = [#tpu.dimension_semantics<parallel>, #tpu.dimension_semantics<parallel>], iteration_bounds = array<i64: 2, 1>, scalar_prefetch = 0 : i64, scratch_operands = 0 : i64, tpu.core_type = #tpu.core_type<tc>, window_params = [{transform_indices = @transform_0, window_bounds = array<i64: 1, 4, 256>}, {pipeline_mode = #tpu.pipeline_mode<synchronous>, transform_indices = @transform_1, window_bounds = array<i64: 4, 4>}, {transform_indices = @transform_2, window_bounds = array<i64: 1, 4, 256>}]} {
    %c0 = arith.constant 0 : index
    %c0_0 = arith.constant 0 : index
    %0 = vector.load %arg3[%c0, %c0_0] : memref<4x4xf32, #tpu.memory_space<vmem>>, vector<4x4xf32>
    %c0_1 = arith.constant 0 : index
    %c0_2 = arith.constant 0 : index
    %c0_3 = arith.constant 0 : index
    %1 = vector.load %arg2[%c0_1, %c0_2, %c0_3] : memref<1x4x256xf32, #tpu.memory_space<vmem>>, vector<1x4x256xf32>
    %2 = vector.extract_strided_slice %0 {offsets = [0, 0], sizes = [4, 1], strides = [1, 1]} : vector<4x4xf32> to vector<4x1xf32>
    %3 = vector.extract_strided_slice %1 {offsets = [0, 0, 0], sizes = [1, 1, 256], strides = [1, 1, 1]} : vector<1x4x256xf32> to vector<1x1x256xf32>
    %4 = vector.shape_cast %2 : vector<4x1xf32> to vector<1x4x1xf32>
    %5 = vector.broadcast %4 : vector<1x4x1xf32> to vector<1x4x256xf32>
    %6 = vector.broadcast %3 : vector<1x1x256xf32> to vector<1x4x256xf32>
    %7 = arith.mulf %5, %6 : vector<1x4x256xf32>
    %8 = vector.extract_strided_slice %0 {offsets = [0, 1], sizes = [4, 1], strides = [1, 1]} : vector<4x4xf32> to vector<4x1xf32>
    %9 = vector.extract_strided_slice %1 {offsets = [0, 1, 0], sizes = [1, 1, 256], strides = [1, 1, 1]} : vector<1x4x256xf32> to vector<1x1x256xf32>
    %10 = vector.shape_cast %8 : vector<4x1xf32> to vector<1x4x1xf32>
    %11 = vector.broadcast %10 : vector<1x4x1xf32> to vector<1x4x256xf32>
    %12 = vector.broadcast %9 : vector<1x1x256xf32> to vector<1x4x256xf32>
    %13 = arith.mulf %11, %12 : vector<1x4x256xf32>
    %14 = arith.addf %7, %13 : vector<1x4x256xf32>
    %15 = vector.extract_strided_slice %0 {offsets = [0, 2], sizes = [4, 1], strides = [1, 1]} : vector<4x4xf32> to vector<4x1xf32>
    %16 = vector.extract_strided_slice %1 {offsets = [0, 2, 0], sizes = [1, 1, 256], strides = [1, 1, 1]} : vector<1x4x256xf32> to vector<1x1x256xf32>
    %17 = vector.shape_cast %15 : vector<4x1xf32> to vector<1x4x1xf32>
    %18 = vector.broadcast %17 : vector<1x4x1xf32> to vector<1x4x256xf32>
    %19 = vector.broadcast %16 : vector<1x1x256xf32> to vector<1x4x256xf32>
    %20 = arith.mulf %18, %19 : vector<1x4x256xf32>
    %21 = arith.addf %14, %20 : vector<1x4x256xf32>
    %22 = vector.extract_strided_slice %0 {offsets = [0, 3], sizes = [4, 1], strides = [1, 1]} : vector<4x4xf32> to vector<4x1xf32>
    %23 = vector.extract_strided_slice %1 {offsets = [0, 3, 0], sizes = [1, 1, 256], strides = [1, 1, 1]} : vector<1x4x256xf32> to vector<1x1x256xf32>
    %24 = vector.shape_cast %22 : vector<4x1xf32> to vector<1x4x1xf32>
    %25 = vector.broadcast %24 : vector<1x4x1xf32> to vector<1x4x256xf32>
    %26 = vector.broadcast %23 : vector<1x1x256xf32> to vector<1x4x256xf32>
    %27 = arith.mulf %25, %26 : vector<1x4x256xf32>
    %28 = arith.addf %21, %27 : vector<1x4x256xf32>
    %c0_4 = arith.constant 0 : index
    %c0_5 = arith.constant 0 : index
    %c0_6 = arith.constant 0 : index
    %29 = vector.load %arg4[%c0_4, %c0_5, %c0_6] : memref<1x4x256xf32, #tpu.memory_space<vmem>>, vector<1x4x256xf32>
    tpu.vector_store %arg4[%c0_4, %c0_5, %c0_6], %28 {strides = array<i32>} : memref<1x4x256xf32, #tpu.memory_space<vmem>>, vector<1x4x256xf32>,
    return
  }
  func.func @transform_0(%arg0: i32, %arg1: i32) -> (i32, i32, i32) {
    %c0_i32 = arith.constant 0 : i32
    %c0_i32_0 = arith.constant 0 : i32
    return %arg0, %c0_i32, %arg1 : i32, i32, i32
  }
  func.func @transform_1(%arg0: i32, %arg1: i32) -> (i32, i32) {
    %c0_i32 = arith.constant 0 : i32
    %c0_i32_0 = arith.constant 0 : i32
    %c0_i32_1 = arith.constant 0 : i32
    return %c0_i32, %c0_i32_0 : i32, i32
  }
  func.func @transform_2(%arg0: i32, %arg1: i32) -> (i32, i32, i32) {
    %c0_i32 = arith.constant 0 : i32
    %c0_i32_0 = arith.constant 0 : i32
    return %arg0, %c0_i32, %arg1 : i32, i32, i32
  }
}

</mosaic_0001>

<llo_original>
// kernel: tpu_custom_call.1
$region0: #{tpu_custom_call.1}
  #allocation0 [shape = 'u32[]', space=smem, size = 0x4, offset = 0x4, fixed_abs, tag = 'smem constant byte address 0x4 - core index']
  #allocation1 [shape = 'u32[72,128]{1,0:T(1,128)}', space=vmem, size = 0x9000, scoped, tag = 'internal scratch']
  %s0 = inlined_call_operand.hbm [shape: f32[2,4,256], index: 0, kind: input, shape index: {}]
  %s1 = inlined_call_operand.hbm [shape: f32[4,4], index: 1, kind: input, shape index: {}]
  %s2 = inlined_call_operand.hbm [shape: f32[2,4,256], index: 2, kind: output, shape index: {}]
  %s3 = sld [smem:[#allocation0]]
  $region49: #{tpu_custom_call.1} parent=0
    _
  %s5 = ssub.s32 1, %s3
  %s6 = scalar_select 0, %s5, %s3
  $region1: #{tpu_custom_call.1} parent=0
    #allocation2 [shape = 'u8[8192]{0}', space=vmem, size = 0x2000, scoped, tag = 'input window, operand 0']
    #allocation3 [shape = 's32[2]{0}', space=sflag, size = 0x8, scoped, tag = 'scoped memory for tpu_custom_call.1']
    #allocation4 [shape = 's32[2]{0}', space=sflag, size = 0x8, scoped, tag = 'scoped memory for tpu_custom_call.1']
    #allocation5 [shape = 'u8[2048]{0}', space=vmem, size = 0x800, scoped, tag = 'input window, operand 1, single buffered']
    #allocation6 [shape = 's32[1]{0}', space=sflag, size = 0x4, scoped, tag = 'scoped memory for tpu_custom_call.1']
    #allocation7 [shape = 'u8[8192]{0}', space=vmem, size = 0x2000, scoped, tag = 'output window, operand 0']
    %7 = vsyncpa [#allocation3], 0
    %s8 = scalar_lea.sflag [#allocation3], 1
    %9 = vsyncpa %s8, 0
    %10 = vsyncpa [#allocation6], 0
    %11 = vsyncpa [#allocation4], 0
    %s12 = scalar_lea.sflag [#allocation4], 1
    %13 = vsyncpa %s12, 0
    loop: start=0, step=1, limit=4
    $region2: #{tpu_custom_call.1} parent=1 // loop_pre_header
      _
    $region3: #{tpu_custom_call.1} parent=1 // loop_header
      %s15 = sphi 0, %s19
      %p16 = scmp.ge.s32.totalorder %s15, 4
      %s22 = sphi 0, %s34
      %s23 = sphi 0, %s30
      %s24 = sphi 0, %s22
      %s25 = sphi 0, %s23
      %s26 = sphi 0, %s24
      %s27 = sphi 0, %s25
      %s39 = sphi 0, %s41
      %s42 = sphi 0, %s39
      %s43 = sphi 0, %s42
      %s59 = sphi 0, %s43
      %s63 = sphi 0, %s63
      %s65 = sphi 0, %s63
      %s66 = sphi 0, %s65
      %s80 = sphi 0, %s66
      %s88 = sphi 0, %s90
      %s91 = sphi 0, %s88
      %s92 = sphi 0, %s91
      %s108 = sphi 0, %s92
    $region4: #{tpu_custom_call.1} parent=1 // loop_header_branch
      %18 = sbr.rel (%p16) target = $region8
    $region5: #{tpu_custom_call.1} parent=1 // loop_body
      %s20 = ssub.s32 %s15, 1
      %s21 = ssub.s32 %s15, 2
      %s28 = sadd.s32 1, %s23
      %p29 = scmp.ge.s32.totalorder %s28, 1
      %s30 = scalar_select %p29, 0, %s28
      %s31 = sadd.s32 1, %s22
      %s32 = scalar_select %p29, %s31, %s22
      %p33 = scmp.ge.s32.totalorder %s32, 2
      %s34 = scalar_select %p33, 0, %s32
      %s35 = ssub.s32 %s22, %s34
      %s36 = ssub.s32 %s23, %s30
      %s37 = sor.u32 %s35, %s36
      %p38 = scmp.eq.s32.totalorder %s37, 0
      %s40 = sadd.s32 %s39, 1
      %s41 = scalar_select %p38, %s39, %s40
      %p44 = pneg %p38
      %p45 = scmp.eq.s32.totalorder %s15, 1
      %p46 = por %p44, %p45
      %p47 = scmp.ne.s32.totalorder %s39, %s42
      %p48 = scmp.eq.s32.totalorder %s15, 0
      %p49 = por %p47, %p48
      %p50 = scmp.ne.s32.totalorder %s39, %s42
      %p51 = scmp.eq.s32.totalorder %s20, 1
      %p52 = por %p50, %p51
      %p53 = scmp.ne.s32.totalorder %s42, %s43
      %p54 = scmp.eq.s32.totalorder %s20, 0
      %p55 = por %p53, %p54
      %p56 = scmp.ne.s32.totalorder %s42, %s43
      %p57 = scmp.eq.s32.totalorder %s21, 1
      %p58 = por %p56, %p57
      %p60 = scmp.ne.s32.totalorder %s43, %s59
      %p61 = scmp.eq.s32.totalorder %s21, 0
      %p62 = por %p60, %p61
      %s64 = sadd.s32 %s63, 1
      %p67 = scmp.eq.s32.totalorder %s15, 1
      %p68 = scmp.ne.s32.totalorder %s63, %s65
      %p69 = scmp.eq.s32.totalorder %s15, 0
      %p70 = por %p68, %p69
      %p71 = scmp.ne.s32.totalorder %s63, %s65
      %p72 = scmp.eq.s32.totalorder %s20, 1
      %p73 = por %p71, %p72
      %p74 = scmp.ne.s32.totalorder %s65, %s66
      %p75 = scmp.eq.s32.totalorder %s20, 0
      %p76 = por %p74, %p75
      %p77 = scmp.ne.s32.totalorder %s65, %s66
      %p78 = scmp.eq.s32.totalorder %s21, 1
      %p79 = por %p77, %p78
      %p81 = scmp.ne.s32.totalorder %s66, %s80
      %p82 = scmp.eq.s32.totalorder %s21, 0
      %p83 = por %p81, %p82
      %s84 = ssub.s32 %s22, %s34
      %s85 = ssub.s32 %s23, %s30
      %s86 = sor.u32 %s84, %s85
      %p87 = scmp.eq.s32.totalorder %s86, 0
      %s89 = sadd.s32 %s88, 1
      %s90 = scalar_select %p87, %s88, %s89
      %p93 = pneg %p87
      %p94 = scmp.eq.s32.totalorder %s15, 1
      %p95 = por %p93, %p94
      %p96 = scmp.ne.s32.totalorder %s88, %s91
      %p97 = scmp.eq.s32.totalorder %s15, 0
      %p98 = por %p96, %p97
      %p99 = scmp.ne.s32.totalorder %s88, %s91
      %p100 = scmp.eq.s32.totalorder %s20, 1
      %p101 = por %p99, %p100
      %p102 = scmp.ne.s32.totalorder %s91, %s92
      %p103 = scmp.eq.s32.totalorder %s20, 0
      %p104 = por %p102, %p103
      %p105 = scmp.ne.s32.totalorder %s91, %s92
      %p106 = scmp.eq.s32.totalorder %s21, 1
      %p107 = por %p105, %p106
      %p109 = scmp.ne.s32.totalorder %s92, %s108
      %p110 = scmp.eq.s32.totalorder %s21, 0
      %p111 = por %p109, %p110
      %p112 = scmp.le.s32.totalorder 1, %s15
      %p113 = scmp.lt.s32.totalorder %s15, 3
      %p114 = pnand %p112, %p113
      %p115 = pneg %p114
      // Predicated region
      $region9: #{tpu_custom_call.1} parent=5 // pred_check
        _
      $region10: #{tpu_custom_call.1} parent=5 // pred_check_branch
        %117 = sbr.rel (%p114) target = $region12
      $region11: #{tpu_custom_call.1} parent=5 // pred_region
        %s118 = ssub.s32 %s15, 1
        // Predicated region
        $region13: #{tpu_custom_call.1} parent=11 // pred_check
          %p119 = pneg %p76
        $region14: #{tpu_custom_call.1} parent=11 // pred_check_branch
          %121 = sbr.rel (%p119) target = $region16
        $region15: #{tpu_custom_call.1} parent=11 // pred_region
          %123 = vsyncadd [#allocation6], 0
          %s125 = sshll.u32 %s1, 4
          %s126 = int_to_ptr.hbm [resolvable:$true] %s125
          %s127 = sshll.u32 [#allocation5], 4
          %s128 = int_to_ptr.vmem [resolvable:$true] %s127
          %130 = dma.hbm_to_vmem [thread:$0]  %s126, 64, %s128, [#allocation6]
        $region16: #{tpu_custom_call.1} parent=11 // pred_fallthru
          _
      $region12: #{tpu_custom_call.1} parent=5 // pred_fallthru
        _
      %p131 = scmp.lt.s32.totalorder %s15, 2
      // Predicated region
      $region17: #{tpu_custom_call.1} parent=5 // pred_check
        %p132 = pneg %p131
      $region18: #{tpu_custom_call.1} parent=5 // pred_check_branch
        %134 = sbr.rel (%p132) target = $region20
      $region19: #{tpu_custom_call.1} parent=5 // pred_region
        // Predicated region
        $region21: #{tpu_custom_call.1} parent=19 // pred_check
          %p135 = pneg %p49
        $region22: #{tpu_custom_call.1} parent=19 // pred_check_branch
          %137 = sbr.rel (%p135) target = $region24
        $region23: #{tpu_custom_call.1} parent=19 // pred_region
          %s138 = sand.u32 %s39, 1
          %s139 = scalar_lea.sflag [#allocation3], %s138
          %s140 = sand.u32 %s39, 1
          %s141 = smul.addr %s140, 8
          %s142 = scalar_lea.vmem [#allocation2], %s141
          %s143 = smul.u32 2, %s23
          %145 = vsyncadd %s139, 0
          %s146 = smul.addr %s22, 2
          %s147 = sadd.s32 %s143, %s146
          %s148 = smul.addr %s147, 4
          %s149 = scalar_lea.hbm %s0, %s148
          %s151 = sshll.u32 %s149, 4
          %s152 = int_to_ptr.hbm [resolvable:$true] %s151
          %s153 = sshll.u32 %s142, 4
          %s154 = int_to_ptr.vmem [resolvable:$true] %s153
          %156 = dma.hbm_to_vmem [thread:$0]  %s152, 128, %s154, %s139
        $region24: #{tpu_custom_call.1} parent=19 // pred_fallthru
          _
      $region20: #{tpu_custom_call.1} parent=5 // pred_fallthru
        _
      %p157 = scmp.le.s32.totalorder 1, %s15
      %p158 = scmp.lt.s32.totalorder %s15, 3
      %p159 = pnand %p157, %p158
      %p160 = pneg %p159
      // Predicated region
      $region25: #{tpu_custom_call.1} parent=5 // pred_check
        _
      $region26: #{tpu_custom_call.1} parent=5 // pred_check_branch
        %162 = sbr.rel (%p159) target = $region28
      $region27: #{tpu_custom_call.1} parent=5 // pred_region
        %s163 = ssub.s32 %s15, 1
        %s164 = sand.u32 %s42, 1
        %s165 = scalar_lea.sflag [#allocation3], %s164
        %s166 = sand.u32 %s42, 1
        %s167 = smul.addr %s166, 8
        %s168 = scalar_lea.vmem [#allocation2], %s167
        // Predicated region
        $region29: #{tpu_custom_call.1} parent=27 // pred_check
          %p169 = pneg %p55
        $region30: #{tpu_custom_call.1} parent=27 // pred_check_branch
          %171 = sbr.rel (%p169) target = $region32
        $region31: #{tpu_custom_call.1} parent=27 // pred_region
          %173 = dma.done %s165, 128
        $region32: #{tpu_custom_call.1} parent=27 // pred_fallthru
          _
        // Predicated region
        $region33: #{tpu_custom_call.1} parent=27 // pred_check
          %p174 = pneg %p76
        $region34: #{tpu_custom_call.1} parent=27 // pred_check_branch
          %176 = sbr.rel (%p174) target = $region36
        $region35: #{tpu_custom_call.1} parent=27 // pred_region
          %178 = dma.done [#allocation6], 64
        $region36: #{tpu_custom_call.1} parent=27 // pred_fallthru
          _
        %s179 = sand.u32 %s42, 1
        %s180 = scalar_lea.sflag [#allocation3], %s179
        %s181 = sand.u32 %s42, 1
        %s182 = smul.addr %s181, 8
        %s183 = scalar_lea.vmem [#allocation2], %s182
        %p184 = pneg %p55
        %p185 = pneg %p52
        %p186 = pneg %p76
        %p187 = pneg %p73
        %p188 = pneg %p104
        %p189 = pneg %p101
        %s190 = sand.u32 %s91, 1
        %s191 = scalar_lea.sflag [#allocation4], %s190
        %s192 = sand.u32 %s91, 1
        %s193 = smul.addr %s192, 8
        %s194 = scalar_lea.vmem [#allocation7], %s193
        %s195 = smul.u32 2, %s25
        %s196 = smul.u32 2, %s25
        %v197 = vld [vmem:[#allocation5] sm:$0xf]
        %v198 = vld [vmem:[%s168] sm:$0xff]
        %200 = vset.pattern.permute.xlu0 0
        %201 = vperm.xlu0 %200, %v197
        %v202 = vpop.permute.xlu0 %201
        %v205 = vperm.slane %v198, 0
        %v206 = vperm.slane %v198, 4
        %v209 = vperm.slane %v205, 0
        %v210 = vperm.slane %v206, 0
        %v211 = vmul.f32 %v202, %v209
        %v212 = vmul.f32 %v202, %v210
        %213 = vset.pattern.permute.xlu0 1
        %214 = vperm.xlu0 %213, %v197
        %v215 = vpop.permute.xlu0 %214
        %v217 = vperm.slane %v198, 1
        %v218 = vperm.slane %v198, 5
        %v221 = vperm.slane %v217, 1
        %v222 = vperm.slane %v218, 1
        %v223 = vmul.f32 %v215, %v221
        %v224 = vmul.f32 %v215, %v222
        %v225 = vadd.f32 %v211, %v223
        %v226 = vadd.f32 %v212, %v224
        %227 = vset.pattern.permute.xlu0 2
        %228 = vperm.xlu0 %227, %v197
        %v229 = vpop.permute.xlu0 %228
        %v231 = vperm.slane %v198, 2
        %v232 = vperm.slane %v198, 6
        %v235 = vperm.slane %v231, 2
        %v236 = vperm.slane %v232, 2
        %v237 = vmul.f32 %v229, %v235
        %v238 = vmul.f32 %v229, %v236
        %v239 = vadd.f32 %v225, %v237
        %v240 = vadd.f32 %v226, %v238
        %241 = vset.pattern.permute.xlu0 3
        %242 = vperm.xlu0 %241, %v197
        %v243 = vpop.permute.xlu0 %242
        %v245 = vperm.slane %v198, 3
        %v246 = vperm.slane %v198, 7
        %v249 = vperm.slane %v245, 3
        %v250 = vperm.slane %v246, 3
        %v251 = vmul.f32 %v243, %v249
        %v252 = vmul.f32 %v243, %v250
        %v253 = vadd.f32 %v239, %v251
        %v254 = vadd.f32 %v240, %v252
        %v257 = vrot.slane %v254, 4
        %vm258 = vcmask 1043456
        %v259 = vsel %vm258, %v253, %v257
        %261 = vst [vmem:[%s194] sm:$0xff] %v259
        %s262 = sand.u32 %s91, 1
        %s263 = scalar_lea.sflag [#allocation4], %s262
        %s264 = sand.u32 %s91, 1
        %s265 = smul.addr %s264, 8
        %s266 = scalar_lea.vmem [#allocation7], %s265
        // Predicated region
        $region37: #{tpu_custom_call.1} parent=27 // pred_check
          %p267 = pneg %p101
        $region38: #{tpu_custom_call.1} parent=27 // pred_check_branch
          %269 = sbr.rel (%p267) target = $region40
        $region39: #{tpu_custom_call.1} parent=27 // pred_region
          %s270 = smul.u32 2, %s25
          %272 = vsyncadd %s263, 0
          %s273 = smul.addr %s24, 2
          %s274 = sadd.s32 %s270, %s273
          %s275 = smul.addr %s274, 4
          %s276 = scalar_lea.hbm %s2, %s275
          %s278 = sshll.u32 %s266, 4
          %s279 = int_to_ptr.vmem [resolvable:$true] %s278
          %s280 = sshll.u32 %s276, 4
          %s281 = int_to_ptr.hbm [resolvable:$true] %s280
          %283 = dma.vmem_to_hbm [thread:$0]  %s279, 128, %s281, %s263
        $region40: #{tpu_custom_call.1} parent=27 // pred_fallthru
          _
      $region28: #{tpu_custom_call.1} parent=5 // pred_fallthru
        _
      %p284 = scmp.le.s32.totalorder 2, %s15
      // Predicated region
      $region41: #{tpu_custom_call.1} parent=5 // pred_check
        %p285 = pneg %p284
      $region42: #{tpu_custom_call.1} parent=5 // pred_check_branch
        %287 = sbr.rel (%p285) target = $region44
      $region43: #{tpu_custom_call.1} parent=5 // pred_region
        %s288 = ssub.s32 %s15, 2
        // Predicated region
        $region45: #{tpu_custom_call.1} parent=43 // pred_check
          %p289 = pneg %p107
        $region46: #{tpu_custom_call.1} parent=43 // pred_check_branch
          %291 = sbr.rel (%p289) target = $region48
        $region47: #{tpu_custom_call.1} parent=43 // pred_region
          %s292 = sand.u32 %s92, 1
          %s293 = scalar_lea.sflag [#allocation4], %s292
          %s294 = sand.u32 %s92, 1
          %s295 = smul.addr %s294, 8
          %s296 = scalar_lea.vmem [#allocation7], %s295
          %298 = dma.done %s293, 128
        $region48: #{tpu_custom_call.1} parent=43 // pred_fallthru
          _
      $region44: #{tpu_custom_call.1} parent=5 // pred_fallthru
        _
    $region6: #{tpu_custom_call.1} parent=1 // loop_footer
      %s19 = sadd.s32 1, %s15
    $region7: #{tpu_custom_call.1} parent=1 // loop_footer_branch
      %14 = sbr.rel target = $region3
    $region8: #{tpu_custom_call.1} parent=1 // loop_exit
      _
    %299 = vsyncpa [#allocation3], 1
    %s300 = scalar_lea.sflag [#allocation3], 1
    %301 = vsyncpa %s300, 1
    %302 = vsyncpa [#allocation6], 1
    %303 = vsyncpa [#allocation4], 1
    %s304 = scalar_lea.sflag [#allocation4], 1
    %305 = vsyncpa %s304, 1

</llo_original>
